<compile_context>
chip_gen: v5e
topology: v5e:2x2
jax: 0.10.0
libtpu: 0.0.40
codegen_flags: <defaults>
</compile_context>

<pallas_src>
import jax
import jax.numpy as jnp
from jax.experimental import pallas as pl
from jax.experimental.pallas import tpu as pltpu

C_IN, C_OUT, KH, KW = 3, 3, 3, 3
TAPS = KH * KW * C_IN  # 27


def _conv_kernel(w_ref, b_ref, x_ref, o_ref):
    # w_ref: VMEM (C_OUT, TAPS)      weights, w_ref[co, (kh*KW+kw)*C_IN + ci] = W[co, ci, kh, kw]
    # b_ref: VMEM (C_OUT, 1) f32     bias column
    # x_ref: VMEM (TAPS, N*ACCW)     pre-shifted (im2col) lane-dense window stack
    # o_ref: VMEM (C_OUT, N*ACCW)    lane-dense output slab
    acc = jnp.dot(w_ref[...], x_ref[...],
                  preferred_element_type=jnp.float32)      # one MXU matmul, f32 acc
    o_ref[...] = (acc + b_ref[...]).astype(o_ref.dtype)    # bias once, cast on store


def conv2d_pallas(x, w, b):
    """x: (N, C_IN, H, W), w: (C_OUT, C_IN, KH, KW), b: (C_OUT,) -> (N, C_OUT, H-2, W-2)."""
    N, cin, H, W = x.shape
    assert cin == C_IN and w.shape == (C_OUT, C_IN, KH, KW) and b.shape == (C_OUT,)
    HO, WO = H - KH + 1, W - KW + 1
    HW = H * W
    max_shift = (KH - 1) * W + (KW - 1)
    accw = pl.cdiv(HW, 128) * 128                 # lane-dense per-image output width
    xw = pl.cdiv(accw + max_shift, 128) * 128     # padded lane-dense input width
    lanes = N * accw                              # batch folded onto the lane axis

    # --- wrapper-side layout plumbing (im2col-lite), all done by XLA ---------
    x_flat = jnp.pad(x.reshape(N, C_IN, HW), ((0, 0), (0, 0), (0, xw - HW)))
    # 9 lane-dense shifted windows, each (N, C_IN, accw): no misaligned slices in-kernel.
    taps = [x_flat[:, :, kh * W + kw: kh * W + kw + accw]
            for kh in range(KH) for kw in range(KW)]
    xs = jnp.stack(taps, axis=0)                  # (TAPS//C_IN, N, C_IN, accw) = (9, N, 3, accw)
    xs = jnp.transpose(xs, (0, 2, 1, 3))          # (9, C_IN, N, accw)
    xs_slab = xs.reshape(TAPS, lanes).astype(x.dtype)   # row = tap*C_IN+ci, col = n*accw+p

    # Weight matrix: [co, (kh*KW+kw)*C_IN + ci] = w[co, ci, kh, kw]; feed MXU in x.dtype.
    w_mat = jnp.transpose(w, (0, 2, 3, 1)).reshape(C_OUT, TAPS).astype(x.dtype)
    b_col = b.reshape(C_OUT, 1).astype(jnp.float32)

    out_slab = pl.pallas_call(
        _conv_kernel,
        out_shape=jax.ShapeDtypeStruct((C_OUT, lanes), x.dtype),
        grid_spec=pltpu.PrefetchScalarGridSpec(
            num_scalar_prefetch=0,
            grid=(1,),                                            # whole batch, one step
            in_specs=[
                pl.BlockSpec((C_OUT, TAPS), lambda n: (0, 0)),    # weights
                pl.BlockSpec((C_OUT, 1), lambda n: (0, 0)),       # bias
                pl.BlockSpec((TAPS, lanes), lambda n: (0, 0)),    # im2col window stack
            ],
            out_specs=pl.BlockSpec((C_OUT, lanes), lambda n: (0, 0)),
        ),
        compiler_params=pltpu.CompilerParams(dimension_semantics=("arbitrary",)),
    )(w_mat, b_col, xs_slab)

    # Undo the lane-dense flattening: slab -> (N, C_OUT, H, W) -> valid (HO, WO) window.
    out = jnp.transpose(out_slab.reshape(C_OUT, N, accw), (1, 0, 2))
    return out[:, :, :HW].reshape(N, C_OUT, H, W)[:, :, :HO, :WO]


if __name__ == "__main__":
    key = jax.random.PRNGKey(0)
    kx, kw, kb = jax.random.split(key, 3)

    # Small shapes consistent with nn.Conv2d(3, 3, (3, 3)): N=2, C=3, 16x16 spatial.
    N, H, W = 2, 16, 16
    x = jax.random.normal(kx, (N, C_IN, H, W), dtype=jnp.float32)

    # Deterministic parameter init (mimics PyTorch's default uniform(-1/sqrt(fan_in), ...)).
    fan_in = C_IN * KH * KW
    bound = 1.0 / (fan_in ** 0.5)
    w = jax.random.uniform(kw, (C_OUT, C_IN, KH, KW), jnp.float32, -bound, bound)
    b = jax.random.uniform(kb, (C_OUT,), jnp.float32, -bound, bound)

    out = jax.block_until_ready(conv2d_pallas(x, w, b))

    # Reference check against XLA's conv (same semantics as nn.Conv2d forward).
    ref = jax.lax.conv_general_dilated(
        x, w, window_strides=(1, 1), padding="VALID",
        dimension_numbers=("NCHW", "OIHW", "NCHW"),
    ) + b.reshape(1, C_OUT, 1, 1)

    assert out.shape == (N, C_OUT, H - KH + 1, W - KW + 1)
    assert jnp.allclose(out, ref, atol=1e-5, rtol=1e-5)
    print("KERNEL_OK")
</pallas_src>

<mosaic_0001>
module attributes {stable_mosaic.version = 11 : i64} {
  func.func @_conv_kernel(%arg0: i32, %arg1: memref<3x27xf32, #tpu.memory_space<vmem>>, %arg2: memref<3x1xf32, #tpu.memory_space<vmem>>, %arg3: memref<27x512xf32, #tpu.memory_space<vmem>>, %arg4: memref<3x512xf32, #tpu.memory_space<vmem>>) attributes {dimension_semantics = [#tpu.dimension_semantics<arbitrary>], iteration_bounds = array<i64: 1>, scalar_prefetch = 0 : i64, scratch_operands = 0 : i64, tpu.core_type = #tpu.core_type<tc>, window_params = [{pipeline_mode = #tpu.pipeline_mode<synchronous>, transform_indices = @transform_0, window_bounds = array<i64: 3, 27>}, {pipeline_mode = #tpu.pipeline_mode<synchronous>, transform_indices = @transform_1, window_bounds = array<i64: 3, 1>}, {pipeline_mode = #tpu.pipeline_mode<synchronous>, transform_indices = @transform_2, window_bounds = array<i64: 27, 512>}, {pipeline_mode = #tpu.pipeline_mode<synchronous>, transform_indices = @transform_3, window_bounds = array<i64: 3, 512>}]} {
    %c0 = arith.constant 0 : index
    %c0_0 = arith.constant 0 : index
    %0 = vector.load %arg1[%c0, %c0_0] : memref<3x27xf32, #tpu.memory_space<vmem>>, vector<3x27xf32>
    %c0_1 = arith.constant 0 : index
    %c0_2 = arith.constant 0 : index
    %1 = vector.load %arg3[%c0_1, %c0_2] : memref<27x512xf32, #tpu.memory_space<vmem>>, vector<27x512xf32>
    %cst = arith.constant dense<0.000000e+00> : vector<3x512xf32>
    %2 = tpu.matmul %0, %1, %cst {dimension_numbers = #tpu.dot_dimension_numbers<[1], [0], [0], [1], [0, 0, 1, 1], [], []>} : vector<3x27xf32>, vector<27x512xf32>, vector<3x512xf32> -> vector<3x512xf32>
    %c0_3 = arith.constant 0 : index
    %c0_4 = arith.constant 0 : index
    %3 = vector.load %arg2[%c0_3, %c0_4] : memref<3x1xf32, #tpu.memory_space<vmem>>, vector<3x1xf32>
    %4 = vector.broadcast %3 : vector<3x1xf32> to vector<3x512xf32>
    %5 = arith.addf %2, %4 : vector<3x512xf32>
    %c0_5 = arith.constant 0 : index
    %c0_6 = arith.constant 0 : index
    %6 = vector.load %arg4[%c0_5, %c0_6] : memref<3x512xf32, #tpu.memory_space<vmem>>, vector<3x512xf32>
    tpu.vector_store %arg4[%c0_5, %c0_6], %5 {strides = array<i32>} : memref<3x512xf32, #tpu.memory_space<vmem>>, vector<3x512xf32>,
    return
  }
  func.func @transform_0(%arg0: i32) -> (i32, i32) {
    %c0_i32 = arith.constant 0 : i32
    %c0_i32_0 = arith.constant 0 : i32
    %c0_i32_1 = arith.constant 0 : i32
    return %c0_i32, %c0_i32_0 : i32, i32
  }
  func.func @transform_1(%arg0: i32) -> (i32, i32) {
    %c0_i32 = arith.constant 0 : i32
    %c0_i32_0 = arith.constant 0 : i32
    %c0_i32_1 = arith.constant 0 : i32
    return %c0_i32, %c0_i32_0 : i32, i32
  }
  func.func @transform_2(%arg0: i32) -> (i32, i32) {
    %c0_i32 = arith.constant 0 : i32
    %c0_i32_0 = arith.constant 0 : i32
    %c0_i32_1 = arith.constant 0 : i32
    return %c0_i32, %c0_i32_0 : i32, i32
  }
  func.func @transform_3(%arg0: i32) -> (i32, i32) {
    %c0_i32 = arith.constant 0 : i32
    %c0_i32_0 = arith.constant 0 : i32
    %c0_i32_1 = arith.constant 0 : i32
    return %c0_i32, %c0_i32_0 : i32, i32
  }
}

</mosaic_0001>

<llo_original>
// kernel: tpu_custom_call.1
$region0: #{tpu_custom_call.1}
  #allocation0 [shape = 'u32[]', space=smem, size = 0x4, offset = 0x4, fixed_abs, tag = 'smem constant byte address 0x4 - core index']
  #allocation1 [shape = 'u32[72,128]{1,0:T(1,128)}', space=vmem, size = 0x9000, scoped, tag = 'internal scratch']
  %s0 = inlined_call_operand.vmem [shape: f32[3,27], index: 0, kind: input, shape index: {}]
  %s1 = inlined_call_operand.vmem [shape: f32[3,1], index: 1, kind: input, shape index: {}]
  %s2 = inlined_call_operand.hbm [shape: f32[27,512], index: 2, kind: input, shape index: {}]
  %s3 = inlined_call_operand.hbm [shape: f32[3,512], index: 3, kind: output, shape index: {}]
  %s4 = sld [smem:[#allocation0]]
  $region26: #{tpu_custom_call.1} parent=0
    _
  %s6 = ssub.s32 1, %s4
  %s7 = scalar_select 0, %s6, %s4
  $region1: #{tpu_custom_call.1} parent=0
    #allocation2 [shape = 'u8[65536]{0}', space=vmem, size = 0x10000, scoped, tag = 'input window, operand 2, single buffered']
    #allocation3 [shape = 's32[1]{0}', space=sflag, size = 0x4, scoped, tag = 'scoped memory for tpu_custom_call.1']
    #allocation4 [shape = 's32[1]{0}', space=sflag, size = 0x4, scoped, tag = 'scoped memory for tpu_custom_call.1']
    #allocation5 [shape = 'u8[8192]{0}', space=vmem, size = 0x2000, scoped, tag = 'output window, operand 0, single buffered']
    %8 = vsyncpa [#allocation3], 0
    %9 = vsyncpa [#allocation4], 0
    // Predicated region
    $region2: #{tpu_custom_call.1} parent=1 // pred_check
      _
    $region3: #{tpu_custom_call.1} parent=1 // pred_check_branch
      %11 = sbr.rel (0) target = $region5
    $region4: #{tpu_custom_call.1} parent=1 // pred_region
      _
    $region5: #{tpu_custom_call.1} parent=1 // pred_fallthru
      _
    // Predicated region
    $region6: #{tpu_custom_call.1} parent=1 // pred_check
      _
    $region7: #{tpu_custom_call.1} parent=1 // pred_check_branch
      %13 = sbr.rel (0) target = $region9
    $region8: #{tpu_custom_call.1} parent=1 // pred_region
      _
    $region9: #{tpu_custom_call.1} parent=1 // pred_fallthru
      _
    // Predicated region
    $region10: #{tpu_custom_call.1} parent=1 // pred_check
      _
    $region11: #{tpu_custom_call.1} parent=1 // pred_check_branch
      %15 = sbr.rel (0) target = $region13
    $region12: #{tpu_custom_call.1} parent=1 // pred_region
      %17 = vsyncadd [#allocation3], 0
      %s18 = sshll.u32 %s2, 4
      %s19 = int_to_ptr.hbm [resolvable:$true] %s18
      %s20 = sshll.u32 [#allocation2], 4
      %s21 = int_to_ptr.vmem [resolvable:$true] %s20
      %26 = dma.hbm_to_vmem [thread:$0]  %s19, 2048, %s21, [#allocation3], 512, 512, 32
    $region13: #{tpu_custom_call.1} parent=1 // pred_fallthru
      _
    // Predicated region
    $region14: #{tpu_custom_call.1} parent=1 // pred_check
      _
    $region15: #{tpu_custom_call.1} parent=1 // pred_check_branch
      %28 = sbr.rel (0) target = $region17
    $region16: #{tpu_custom_call.1} parent=1 // pred_region
      %30 = dma.done [#allocation3], 2048
    $region17: #{tpu_custom_call.1} parent=1 // pred_fallthru
      _
    %v31 = vld [vmem:[%s0] sm:$0x7]
    %v32 = vld [vmem:[#allocation2] sm:$0xff]
    %v33 = vld [vmem:[#allocation2 + $0x8] sm:$0xff]
    %v34 = vld [vmem:[#allocation2 + $0x10] sm:$0xff]
    %v35 = vld [vmem:[#allocation2 + $0x18] sm:$0xff]
    %v36 = vld [vmem:[#allocation2 + $0x20] sm:$0xff]
    %v37 = vld [vmem:[#allocation2 + $0x28] sm:$0xff]
    %v38 = vld [vmem:[#allocation2 + $0x30] sm:$0xff]
    %v39 = vld [vmem:[#allocation2 + $0x38] sm:$0xff]
    %v40 = vld [vmem:[#allocation2 + $0x40] sm:$0xff]
    %v41 = vld [vmem:[#allocation2 + $0x48] sm:$0xff]
    %v42 = vld [vmem:[#allocation2 + $0x50] sm:$0xff]
    %v43 = vld [vmem:[#allocation2 + $0x58] sm:$0xff]
    %v44 = vld [vmem:[#allocation2 + $0x60] sm:$0x7]
    %v45 = vld [vmem:[#allocation2 + $0x68] sm:$0x7]
    %v46 = vld [vmem:[#allocation2 + $0x70] sm:$0x7]
    %v47 = vld [vmem:[#allocation2 + $0x78] sm:$0x7]
    %v48 = vld [vmem:[%s1] sm:$0x7]
    %50 = vset.pattern.permute.xlu0 0
    %51 = vperm.xlu0 %50, %v48
    %v52 = vpop.permute.xlu0 %51
    %vm54 = vcmask 220160
    %v56 = vsel %vm54, %v31, 0
    %vm58 = vcmask 1042432
    %v60 = vsel %vm58, %v44, 0
    %v63 = vsel %vm58, %v45, 0
    %v66 = vsel %vm58, %v46, 0
    %v69 = vsel %vm58, %v47, 0
    %71 = vmatpush.msra.mxu0 0.0
    %72 = vmatpush.msra.mxu0 0.0
    %73 = vmatpush.msra.mxu0 0.0
    %74 = vmatpush.msra.mxu0 0.0
    %75 = vmatpush.msra.mxu0 0.0
    %76 = vmatpush.msra.mxu0 0.0
    %77 = vmatpush.msra.mxu0 0.0
    %78 = vmatpush.msra.mxu0 0.0
    %79 = vmatpush.msra.mxu0 0.0
    %80 = vmatpush.msra.mxu0 0.0
    %81 = vmatpush.msra.mxu0 0.0
    %82 = vmatpush.msra.mxu0 0.0
    %83 = vmatpush.msra.mxu0 %v60
    %84 = vmatpush.msra.mxu0 %v40
    %85 = vmatpush.msra.mxu0 %v36
    %86 = vmatpush.msra.mxu0 %v32
    %87 = vmatmul.f32.gmra.mxu0 %v56
    %v88 = vpop.f32.mrf.mxu0
    %v89 = vadd.f32 %v52, %v88
    %90 = vdwg.mxu0
    %91 = vmatpush.msra.mxu0 0.0
    %92 = vmatpush.msra.mxu0 0.0
    %93 = vmatpush.msra.mxu0 0.0
    %94 = vmatpush.msra.mxu0 0.0
    %95 = vmatpush.msra.mxu0 0.0
    %96 = vmatpush.msra.mxu0 0.0
    %97 = vmatpush.msra.mxu0 0.0
    %98 = vmatpush.msra.mxu0 0.0
    %99 = vmatpush.msra.mxu0 0.0
    %100 = vmatpush.msra.mxu0 0.0
    %101 = vmatpush.msra.mxu0 0.0
    %102 = vmatpush.msra.mxu0 0.0
    %103 = vmatpush.msra.mxu0 %v63
    %104 = vmatpush.msra.mxu0 %v41
    %105 = vmatpush.msra.mxu0 %v37
    %106 = vmatpush.msra.mxu0 %v33
    %107 = vmatmul.f32.gmra.mxu0 %v56
    %v108 = vpop.f32.mrf.mxu0
    %v109 = vadd.f32 %v52, %v108
    %110 = vdwg.mxu0
    %111 = vmatpush.msra.mxu0 0.0
    %112 = vmatpush.msra.mxu0 0.0
    %113 = vmatpush.msra.mxu0 0.0
    %114 = vmatpush.msra.mxu0 0.0
    %115 = vmatpush.msra.mxu0 0.0
    %116 = vmatpush.msra.mxu0 0.0
    %117 = vmatpush.msra.mxu0 0.0
    %118 = vmatpush.msra.mxu0 0.0
    %119 = vmatpush.msra.mxu0 0.0
    %120 = vmatpush.msra.mxu0 0.0
    %121 = vmatpush.msra.mxu0 0.0
    %122 = vmatpush.msra.mxu0 0.0
    %123 = vmatpush.msra.mxu0 %v66
    %124 = vmatpush.msra.mxu0 %v42
    %125 = vmatpush.msra.mxu0 %v38
    %126 = vmatpush.msra.mxu0 %v34
    %127 = vmatmul.f32.gmra.mxu0 %v56
    %v128 = vpop.f32.mrf.mxu0
    %v129 = vadd.f32 %v52, %v128
    %130 = vdwg.mxu0
    %131 = vmatpush.msra.mxu0 0.0
    %132 = vmatpush.msra.mxu0 0.0
    %133 = vmatpush.msra.mxu0 0.0
    %134 = vmatpush.msra.mxu0 0.0
    %135 = vmatpush.msra.mxu0 0.0
    %136 = vmatpush.msra.mxu0 0.0
    %137 = vmatpush.msra.mxu0 0.0
    %138 = vmatpush.msra.mxu0 0.0
    %139 = vmatpush.msra.mxu0 0.0
    %140 = vmatpush.msra.mxu0 0.0
    %141 = vmatpush.msra.mxu0 0.0
    %142 = vmatpush.msra.mxu0 0.0
    %143 = vmatpush.msra.mxu0 %v69
    %144 = vmatpush.msra.mxu0 %v43
    %145 = vmatpush.msra.mxu0 %v39
    %146 = vmatpush.msra.mxu0 %v35
    %147 = vmatmul.f32.gmra.mxu0 %v56
    %v148 = vpop.f32.mrf.mxu0
    %v149 = vadd.f32 %v52, %v148
    %150 = vdwg.mxu0
    %v155 = vrot.slane %v109, 4
    %v156 = vrot.slane %v149, 4
    %vm157 = vcmask 1043456
    %v158 = vsel %vm157, %v89, %v155
    %v159 = vsel %vm157, %v129, %v156
    %162 = vst [vmem:[#allocation5] sm:$0x77] %v158
    %163 = vst [vmem:[#allocation5 + $0x8] sm:$0x77] %v159
    // Predicated region
    $region18: #{tpu_custom_call.1} parent=1 // pred_check
      _
    $region19: #{tpu_custom_call.1} parent=1 // pred_check_branch
      %165 = sbr.rel (0) target = $region21
    $region20: #{tpu_custom_call.1} parent=1 // pred_region
      %167 = vsyncadd [#allocation4], 0
      %s169 = sshll.u32 [#allocation5], 4
      %s170 = int_to_ptr.vmem [resolvable:$true] %s169
      %s171 = sshll.u32 %s3, 4
      %s172 = int_to_ptr.hbm [resolvable:$true] %s171
      %174 = dma.vmem_to_hbm [thread:$0]  %s170, 256, %s172, [#allocation4]
    $region21: #{tpu_custom_call.1} parent=1 // pred_fallthru
      _
    // Predicated region
    $region22: #{tpu_custom_call.1} parent=1 // pred_check
      _
    $region23: #{tpu_custom_call.1} parent=1 // pred_check_branch
      %176 = sbr.rel (0) target = $region25
    $region24: #{tpu_custom_call.1} parent=1 // pred_region
      %178 = dma.done [#allocation4], 256
    $region25: #{tpu_custom_call.1} parent=1 // pred_fallthru
      _
    %179 = vsyncpa [#allocation3], 1
    %180 = vsyncpa [#allocation4], 1

</llo_original>
